<compile_context>
chip_gen: v7x
topology: tpu7x:2x2x1
jax: 0.10.0
libtpu: 0.0.40
codegen_flags: <defaults>
</compile_context>

<pallas_src>
import jax
import jax.numpy as jnp
from jax.experimental import pallas as pl
from jax.experimental.pallas import tpu as pltpu

_LANE = 128
_TARGET_BLOCK_BYTES = 4 << 20   # per-buffer padded block footprint budget
_VMEM_LIMIT_BYTES = 48 << 20    # raised scoped-VMEM limit (safe on v5e/v6e/v7x)


def _sd_kernel_skip(scale_ref, x_ref, skip_ref, o_ref):
    # scale_ref: (tile_b, 1) f32, broadcast over the lane axis.
    y = x_ref[...].astype(jnp.float32) * scale_ref[...]
    y = y + skip_ref[...].astype(jnp.float32)
    o_ref[...] = y.astype(o_ref.dtype)


def _sd_kernel_noskip(scale_ref, x_ref, o_ref):
    y = x_ref[...].astype(jnp.float32) * scale_ref[...]
    o_ref[...] = y.astype(o_ref.dtype)


def _choose_tiles(B, N, itemsize):
    """Pick (tile_b, tile_n) so the padded VMEM footprint of one data block
    stays under _TARGET_BLOCK_BYTES, preferring full rows (pack samples)."""
    sub = max(8, 32 // itemsize)                  # sublane multiple per dtype
    n_cols_pad = pl.cdiv(N, _LANE) * _LANE        # lane-padded row width
    row_foot = n_cols_pad * itemsize              # bytes per lane-padded row
    groups_fit = _TARGET_BLOCK_BYTES // (row_foot * sub)

    if groups_fit >= 1:
        # Full-width rows fit: pack as many samples as the budget allows.
        tile_b_cap = groups_fit * sub             # multiple of `sub`
        tile_b = B if B <= tile_b_cap else tile_b_cap
        tile_n = N                                # full dim -> always legal
    else:
        # A single sublane-group at full width blows the budget: split columns.
        tile_b = B if B <= sub else sub
        tile_n = max(_LANE,
                     (_TARGET_BLOCK_BYTES // (sub * itemsize)) // _LANE * _LANE)
        tile_n = min(tile_n, n_cols_pad)          # stays a multiple of 128
    return tile_b, tile_n


def stochastic_depth(x, skip=None, *, drop_prob=0.1, training=True, seed=0, key=None):
    """Pallas implementation of StochasticDepth.forward (per-sample drop).

    training=False or drop_prob==0 -> x + (skip or 0)              (plain JAX)
    drop_prob>=1                   -> skip (or zeros)              (all dropped)
    otherwise                      -> (skip or 0) + x * m_b / keep_prob
    with m_b ~ Bernoulli(keep_prob) per batch element, broadcast over the
    remaining axes (same recipe as torch: floor(keep_prob + U[0,1))).

    NOTE: pass a fresh `key` (or `seed`) every training step, otherwise the
    same samples are dropped each iteration.
    """
    has_skip = skip is not None

    if (not training) or drop_prob == 0.0:
        # Pure elementwise add; no reason to pay kernel-launch/pipeline cost.
        return x + skip if has_skip else x

    if drop_prob >= 1.0:
        # Every residual branch dropped; avoid 0 * inf NaNs.
        return skip if has_skip else jnp.zeros_like(x)

    keep_prob = 1.0 - float(drop_prob)
    if key is None:
        key = jax.random.PRNGKey(seed)

    B = int(x.shape[0])
    orig_shape = x.shape
    N = 1
    for d in orig_shape[1:]:
        N *= int(d)

    # Per-sample Bernoulli(keep_prob) mask folded with 1/keep_prob into one
    # f32 scale per sample (no runtime divide in the kernel).
    u = jax.random.uniform(key, (B,), dtype=jnp.float32)
    mask = jnp.floor(jnp.float32(keep_prob) + u)
    scale = (mask * jnp.float32(1.0 / keep_prob)).reshape(B, 1)

    itemsize = jnp.dtype(x.dtype).itemsize
    tile_b, tile_n = _choose_tiles(B, N, itemsize)
    grid = (pl.cdiv(B, tile_b), pl.cdiv(N, tile_n))

    # If everything collapsed into a single block, split the lane axis so a
    # v7x chip can shard across both TensorCores (and pipelining can overlap).
    if grid[0] * grid[1] == 1 and tile_n >= 2 * _LANE:
        tile_n = pl.cdiv(tile_n, 2 * _LANE) * _LANE   # multiple of 128, < N
        grid = (grid[0], pl.cdiv(N, tile_n))

    data_block = (tile_b, tile_n)
    data_map = lambda bi, ni: (bi, ni)
    scale_block = (tile_b, 1)
    scale_map = lambda bi, ni: (bi, 0)

    x2 = x.reshape(B, N)                          # free view, no copy / pad
    args = [scale, x2]
    in_specs = [pl.BlockSpec(scale_block, scale_map),
                pl.BlockSpec(data_block, data_map)]
    if has_skip:
        args.append(skip.reshape(B, N))
        in_specs.append(pl.BlockSpec(data_block, data_map))
        kernel = _sd_kernel_skip
    else:
        kernel = _sd_kernel_noskip

    out2 = pl.pallas_call(
        kernel,
        out_shape=jax.ShapeDtypeStruct((B, N), x.dtype),
        grid_spec=pltpu.PrefetchScalarGridSpec(
            num_scalar_prefetch=0,
            grid=grid,
            in_specs=in_specs,
            out_specs=pl.BlockSpec(data_block, data_map),
        ),
        compiler_params=pltpu.CompilerParams(
            dimension_semantics=("parallel", "parallel"),
            vmem_limit_bytes=_VMEM_LIMIT_BYTES,
        ),
    )(*args)

    return out2.reshape(orig_shape)


if __name__ == "__main__":
    key = jax.random.PRNGKey(0)
    kx, ks = jax.random.split(key)
    x = jax.random.normal(kx, (2, 4, 16, 16), dtype=jnp.float32)
    skip = jax.random.normal(ks, (2, 4, 16, 16), dtype=jnp.float32)

    # 1) inference path: exact x + skip
    out_eval = stochastic_depth(x, skip, drop_prob=0.1, training=False)
    jax.block_until_ready(out_eval)
    assert jnp.allclose(out_eval, x + skip, atol=1e-6), "eval path mismatch"

    # 2) training path with skip: each batch element either dropped (-> skip)
    #    or kept (-> skip + x/keep_prob)
    drop_prob = 0.5
    keep_prob = 1.0 - drop_prob
    out_tr = stochastic_depth(x, skip, drop_prob=drop_prob, training=True, seed=123)
    jax.block_until_ready(out_tr)
    diff = out_tr - skip
    for b in range(x.shape[0]):
        kept = bool(jnp.allclose(diff[b], x[b] / keep_prob, atol=1e-5))
        dropped = bool(jnp.allclose(diff[b], 0.0, atol=1e-6))
        assert kept or dropped, f"batch {b}: not a valid stochastic-depth output"

    # 3) training path without skip
    out_ns = stochastic_depth(x, None, drop_prob=drop_prob, training=True, seed=7)
    jax.block_until_ready(out_ns)
    for b in range(x.shape[0]):
        kept = bool(jnp.allclose(out_ns[b], x[b] / keep_prob, atol=1e-5))
        dropped = bool(jnp.allclose(out_ns[b], 0.0, atol=1e-6))
        assert kept or dropped, f"batch {b}: invalid output (no skip)"

    # 4) drop_prob >= 1 guard: everything dropped, no NaNs
    out_all = stochastic_depth(x, skip, drop_prob=1.0, training=True, seed=3)
    jax.block_until_ready(out_all)
    assert jnp.allclose(out_all, skip, atol=1e-6), "drop_prob=1 path mismatch"

    print("KERNEL_OK")
</pallas_src>

<mosaic_0001>
module attributes {stable_mosaic.version = 11 : i64} {
  func.func @_sd_kernel_skip(%arg0: i32, %arg1: i32, %arg2: memref<2x1xf32, #tpu.memory_space<vmem>>, %arg3: memref<2x512xf32, #tpu.memory_space<vmem>>, %arg4: memref<2x512xf32, #tpu.memory_space<vmem>>, %arg5: memref<2x512xf32, #tpu.memory_space<vmem>>) attributes {dimension_semantics = [#tpu.dimension_semantics<parallel>, #tpu.dimension_semantics<parallel>], iteration_bounds = array<i64: 1, 2>, scalar_prefetch = 0 : i64, scratch_operands = 0 : i64, tpu.core_type = #tpu.core_type<tc>, window_params = [{transform_indices = @transform_0, window_bounds = array<i64: 2, 1>}, {transform_indices = @transform_1, window_bounds = array<i64: 2, 512>}, {transform_indices = @transform_2, window_bounds = array<i64: 2, 512>}, {transform_indices = @transform_3, window_bounds = array<i64: 2, 512>}]} {
    %c0 = arith.constant 0 : index
    %c0_0 = arith.constant 0 : index
    %0 = vector.load %arg3[%c0, %c0_0] : memref<2x512xf32, #tpu.memory_space<vmem>>, vector<2x512xf32>
    %c0_1 = arith.constant 0 : index
    %c0_2 = arith.constant 0 : index
    %1 = vector.load %arg2[%c0_1, %c0_2] : memref<2x1xf32, #tpu.memory_space<vmem>>, vector<2x1xf32>
    %2 = vector.broadcast %1 : vector<2x1xf32> to vector<2x512xf32>
    %3 = arith.mulf %0, %2 : vector<2x512xf32>
    %c0_3 = arith.constant 0 : index
    %c0_4 = arith.constant 0 : index
    %4 = vector.load %arg4[%c0_3, %c0_4] : memref<2x512xf32, #tpu.memory_space<vmem>>, vector<2x512xf32>
    %5 = arith.addf %3, %4 : vector<2x512xf32>
    %c0_5 = arith.constant 0 : index
    %c0_6 = arith.constant 0 : index
    %6 = vector.load %arg5[%c0_5, %c0_6] : memref<2x512xf32, #tpu.memory_space<vmem>>, vector<2x512xf32>
    tpu.vector_store %arg5[%c0_5, %c0_6], %5 {strides = array<i32>} : memref<2x512xf32, #tpu.memory_space<vmem>>, vector<2x512xf32>,
    return
  }
  func.func @transform_0(%arg0: i32, %arg1: i32) -> (i32, i32) {
    %c0_i32 = arith.constant 0 : i32
    %c0_i32_0 = arith.constant 0 : i32
    return %arg0, %c0_i32 : i32, i32
  }
  func.func @transform_1(%arg0: i32, %arg1: i32) -> (i32, i32) {
    %c0_i32 = arith.constant 0 : i32
    return %arg0, %arg1 : i32, i32
  }
  func.func @transform_2(%arg0: i32, %arg1: i32) -> (i32, i32) {
    %c0_i32 = arith.constant 0 : i32
    return %arg0, %arg1 : i32, i32
  }
  func.func @transform_3(%arg0: i32, %arg1: i32) -> (i32, i32) {
    %c0_i32 = arith.constant 0 : i32
    return %arg0, %arg1 : i32, i32
  }
}

</mosaic_0001>

<llo_original>
// kernel: tpu_custom_call.1
$region0: #{tpu_custom_call.1}
  #allocation0 [shape = 'u32[]', space=smem, size = 0x4, offset = 0x4, fixed_abs, tag = 'smem constant byte address 0x4 - core index']
  #allocation1 [shape = 'u32[144,128]{1,0:T(1,128)}', space=vmem, size = 0x12000, scoped, tag = 'internal scratch']
  %s0 = inlined_call_operand.vmem [shape: f32[2,1], index: 0, kind: input, shape index: {}]
  %s1 = inlined_call_operand.hbm [shape: f32[2,1024], index: 1, kind: input, shape index: {}]
  %s2 = inlined_call_operand.hbm [shape: f32[2,1024], index: 2, kind: input, shape index: {}]
  %s3 = inlined_call_operand.hbm [shape: f32[2,1024], index: 3, kind: output, shape index: {}]
  %s4 = sld [smem:[#allocation0]]
  $region53: #{tpu_custom_call.1} parent=0
    _
  %s6 = ssub.s32 1, %s4
  %s7 = scalar_select 0, %s6, %s4
  $region1: #{tpu_custom_call.1} parent=0
    #allocation2 [shape = 'u8[8192]{0}', space=vmem, size = 0x2000, scoped, tag = 'input window, operand 1']
    #allocation3 [shape = 's32[2]{0}', space=sflag, size = 0x8, scoped, tag = 'scoped memory for tpu_custom_call.1']
    #allocation4 [shape = 's32[2]{0}', space=sflag, size = 0x8, scoped, tag = 'scoped memory for tpu_custom_call.1']
    #allocation5 [shape = 'u8[8192]{0}', space=vmem, size = 0x2000, scoped, tag = 'input window, operand 2']
    #allocation6 [shape = 's32[2]{0}', space=sflag, size = 0x8, scoped, tag = 'scoped memory for tpu_custom_call.1']
    #allocation7 [shape = 'u8[8192]{0}', space=vmem, size = 0x2000, scoped, tag = 'output window, operand 0']
    %8 = vsyncpa [#allocation3], 0
    %s9 = scalar_lea.sflag [#allocation3], 1
    %10 = vsyncpa %s9, 0
    %11 = vsyncpa [#allocation6], 0
    %s12 = scalar_lea.sflag [#allocation6], 1
    %13 = vsyncpa %s12, 0
    %14 = vsyncpa [#allocation4], 0
    %s15 = scalar_lea.sflag [#allocation4], 1
    %16 = vsyncpa %s15, 0
    loop: start=0, step=1, limit=4
    $region2: #{tpu_custom_call.1} parent=1 // loop_pre_header
      _
    $region3: #{tpu_custom_call.1} parent=1 // loop_header
      %s18 = sphi 0, %s22
      %p19 = scmp.ge.s32.totalorder %s18, 4
      %s25 = sphi 0, %s37
      %s26 = sphi 0, %s33
      %s27 = sphi 0, %s25
      %s28 = sphi 0, %s26
      %s29 = sphi 0, %s27
      %s30 = sphi 0, %s28
      %s40 = sphi 0, %s42
      %s43 = sphi 0, %s40
      %s44 = sphi 0, %s43
      %s60 = sphi 0, %s44
      %s68 = sphi 0, %s70
      %s71 = sphi 0, %s68
      %s72 = sphi 0, %s71
      %s88 = sphi 0, %s72
      %s96 = sphi 0, %s98
      %s99 = sphi 0, %s96
      %s100 = sphi 0, %s99
      %s116 = sphi 0, %s100
      %s124 = sphi 0, %s126
      %s127 = sphi 0, %s124
      %s128 = sphi 0, %s127
      %s144 = sphi 0, %s128
    $region4: #{tpu_custom_call.1} parent=1 // loop_header_branch
      %21 = sbr.rel (%p19) target = $region8
    $region5: #{tpu_custom_call.1} parent=1 // loop_body
      %s23 = ssub.s32 %s18, 1
      %s24 = ssub.s32 %s18, 2
      %s31 = sadd.s32 1, %s26
      %p32 = scmp.ge.s32.totalorder %s31, 2
      %s33 = scalar_select %p32, 0, %s31
      %s34 = sadd.s32 1, %s25
      %s35 = scalar_select %p32, %s34, %s25
      %p36 = scmp.ge.s32.totalorder %s35, 1
      %s37 = scalar_select %p36, 0, %s35
      %s38 = ssub.s32 %s25, %s37
      %p39 = scmp.eq.s32.totalorder %s38, 0
      %s41 = sadd.s32 %s40, 1
      %s42 = scalar_select %p39, %s40, %s41
      %p45 = pneg %p39
      %p46 = scmp.eq.s32.totalorder %s18, 1
      %p47 = por %p45, %p46
      %p48 = scmp.ne.s32.totalorder %s40, %s43
      %p49 = scmp.eq.s32.totalorder %s18, 0
      %p50 = por %p48, %p49
      %p51 = scmp.ne.s32.totalorder %s40, %s43
      %p52 = scmp.eq.s32.totalorder %s23, 1
      %p53 = por %p51, %p52
      %p54 = scmp.ne.s32.totalorder %s43, %s44
      %p55 = scmp.eq.s32.totalorder %s23, 0
      %p56 = por %p54, %p55
      %p57 = scmp.ne.s32.totalorder %s43, %s44
      %p58 = scmp.eq.s32.totalorder %s24, 1
      %p59 = por %p57, %p58
      %p61 = scmp.ne.s32.totalorder %s44, %s60
      %p62 = scmp.eq.s32.totalorder %s24, 0
      %p63 = por %p61, %p62
      %s64 = ssub.s32 %s25, %s37
      %s65 = ssub.s32 %s26, %s33
      %s66 = sor.u32 %s64, %s65
      %p67 = scmp.eq.s32.totalorder %s66, 0
      %s69 = sadd.s32 %s68, 1
      %s70 = scalar_select %p67, %s68, %s69
      %p73 = pneg %p67
      %p74 = scmp.eq.s32.totalorder %s18, 1
      %p75 = por %p73, %p74
      %p76 = scmp.ne.s32.totalorder %s68, %s71
      %p77 = scmp.eq.s32.totalorder %s18, 0
      %p78 = por %p76, %p77
      %p79 = scmp.ne.s32.totalorder %s68, %s71
      %p80 = scmp.eq.s32.totalorder %s23, 1
      %p81 = por %p79, %p80
      %p82 = scmp.ne.s32.totalorder %s71, %s72
      %p83 = scmp.eq.s32.totalorder %s23, 0
      %p84 = por %p82, %p83
      %p85 = scmp.ne.s32.totalorder %s71, %s72
      %p86 = scmp.eq.s32.totalorder %s24, 1
      %p87 = por %p85, %p86
      %p89 = scmp.ne.s32.totalorder %s72, %s88
      %p90 = scmp.eq.s32.totalorder %s24, 0
      %p91 = por %p89, %p90
      %s92 = ssub.s32 %s25, %s37
      %s93 = ssub.s32 %s26, %s33
      %s94 = sor.u32 %s92, %s93
      %p95 = scmp.eq.s32.totalorder %s94, 0
      %s97 = sadd.s32 %s96, 1
      %s98 = scalar_select %p95, %s96, %s97
      %p101 = pneg %p95
      %p102 = scmp.eq.s32.totalorder %s18, 1
      %p103 = por %p101, %p102
      %p104 = scmp.ne.s32.totalorder %s96, %s99
      %p105 = scmp.eq.s32.totalorder %s18, 0
      %p106 = por %p104, %p105
      %p107 = scmp.ne.s32.totalorder %s96, %s99
      %p108 = scmp.eq.s32.totalorder %s23, 1
      %p109 = por %p107, %p108
      %p110 = scmp.ne.s32.totalorder %s99, %s100
      %p111 = scmp.eq.s32.totalorder %s23, 0
      %p112 = por %p110, %p111
      %p113 = scmp.ne.s32.totalorder %s99, %s100
      %p114 = scmp.eq.s32.totalorder %s24, 1
      %p115 = por %p113, %p114
      %p117 = scmp.ne.s32.totalorder %s100, %s116
      %p118 = scmp.eq.s32.totalorder %s24, 0
      %p119 = por %p117, %p118
      %s120 = ssub.s32 %s25, %s37
      %s121 = ssub.s32 %s26, %s33
      %s122 = sor.u32 %s120, %s121
      %p123 = scmp.eq.s32.totalorder %s122, 0
      %s125 = sadd.s32 %s124, 1
      %s126 = scalar_select %p123, %s124, %s125
      %p129 = pneg %p123
      %p130 = scmp.eq.s32.totalorder %s18, 1
      %p131 = por %p129, %p130
      %p132 = scmp.ne.s32.totalorder %s124, %s127
      %p133 = scmp.eq.s32.totalorder %s18, 0
      %p134 = por %p132, %p133
      %p135 = scmp.ne.s32.totalorder %s124, %s127
      %p136 = scmp.eq.s32.totalorder %s23, 1
      %p137 = por %p135, %p136
      %p138 = scmp.ne.s32.totalorder %s127, %s128
      %p139 = scmp.eq.s32.totalorder %s23, 0
      %p140 = por %p138, %p139
      %p141 = scmp.ne.s32.totalorder %s127, %s128
      %p142 = scmp.eq.s32.totalorder %s24, 1
      %p143 = por %p141, %p142
      %p145 = scmp.ne.s32.totalorder %s128, %s144
      %p146 = scmp.eq.s32.totalorder %s24, 0
      %p147 = por %p145, %p146
      %p148 = scmp.le.s32.totalorder 1, %s18
      %p149 = scmp.lt.s32.totalorder %s18, 3
      %p150 = pnand %p148, %p149
      %p151 = pneg %p150
      // Predicated region
      $region9: #{tpu_custom_call.1} parent=5 // pred_check
        _
      $region10: #{tpu_custom_call.1} parent=5 // pred_check_branch
        %153 = sbr.rel (%p150) target = $region12
      $region11: #{tpu_custom_call.1} parent=5 // pred_region
        %s154 = ssub.s32 %s18, 1
        // Predicated region
        $region13: #{tpu_custom_call.1} parent=11 // pred_check
          %p155 = pneg %p56
        $region14: #{tpu_custom_call.1} parent=11 // pred_check_branch
          %157 = sbr.rel (%p155) target = $region16
        $region15: #{tpu_custom_call.1} parent=11 // pred_region
          %p158 = scmp.lt.s32.totalorder %s27, 0
          %s159 = scalar_select %p158, %s27, 0
          %s160 = smul.addr %s159, 2
          %s161 = scalar_lea.vmem %s0, %s160
        $region16: #{tpu_custom_call.1} parent=11 // pred_fallthru
          _
      $region12: #{tpu_custom_call.1} parent=5 // pred_fallthru
        _
      %p162 = scmp.lt.s32.totalorder %s18, 2
      // Predicated region
      $region17: #{tpu_custom_call.1} parent=5 // pred_check
        %p163 = pneg %p162
      $region18: #{tpu_custom_call.1} parent=5 // pred_check_branch
        %165 = sbr.rel (%p163) target = $region20
      $region19: #{tpu_custom_call.1} parent=5 // pred_region
        // Predicated region
        $region21: #{tpu_custom_call.1} parent=19 // pred_check
          %p166 = pneg %p78
        $region22: #{tpu_custom_call.1} parent=19 // pred_check_branch
          %168 = sbr.rel (%p166) target = $region24
        $region23: #{tpu_custom_call.1} parent=19 // pred_region
          %s169 = sand.u32 %s68, 1
          %s170 = scalar_lea.sflag [#allocation3], %s169
          %s171 = sand.u32 %s68, 1
          %s172 = smul.addr %s171, 8
          %s173 = scalar_lea.vmem [#allocation2], %s172
          %s174 = smul.u32 4, %s26
          %s176 = ssub.s32 128, 128
          %177 = vsyncadd %s170, %s176
          %s178 = smul.addr %s25, 8
          %s179 = sadd.s32 %s174, %s178
          %s180 = smul.addr %s179, 32
          %s181 = scalar_lea.hbm %s1, %s180
          %s183 = sshll.u32 %s173, 4
          %s184 = int_to_ptr.vmem [resolvable:$true] %s183
          %186 = dma.hbm_to_vmem [thread:$0]  %s181, 128, %s184, %s170
        $region24: #{tpu_custom_call.1} parent=19 // pred_fallthru
          _
        // Predicated region
        $region25: #{tpu_custom_call.1} parent=19 // pred_check
          %p187 = pneg %p106
        $region26: #{tpu_custom_call.1} parent=19 // pred_check_branch
          %189 = sbr.rel (%p187) target = $region28
        $region27: #{tpu_custom_call.1} parent=19 // pred_region
          %s190 = sand.u32 %s96, 1
          %s191 = scalar_lea.sflag [#allocation6], %s190
          %s192 = sand.u32 %s96, 1
          %s193 = smul.addr %s192, 8
          %s194 = scalar_lea.vmem [#allocation5], %s193
          %s195 = smul.u32 4, %s26
          %s197 = ssub.s32 128, 128
          %198 = vsyncadd %s191, %s197
          %s199 = smul.addr %s25, 8
          %s200 = sadd.s32 %s195, %s199
          %s201 = smul.addr %s200, 32
          %s202 = scalar_lea.hbm %s2, %s201
          %s204 = sshll.u32 %s194, 4
          %s205 = int_to_ptr.vmem [resolvable:$true] %s204
          %207 = dma.hbm_to_vmem [thread:$0]  %s202, 128, %s205, %s191
        $region28: #{tpu_custom_call.1} parent=19 // pred_fallthru
          _
      $region20: #{tpu_custom_call.1} parent=5 // pred_fallthru
        _
      %p208 = scmp.le.s32.totalorder 1, %s18
      %p209 = scmp.lt.s32.totalorder %s18, 3
      %p210 = pnand %p208, %p209
      %p211 = pneg %p210
      // Predicated region
      $region29: #{tpu_custom_call.1} parent=5 // pred_check
        _
      $region30: #{tpu_custom_call.1} parent=5 // pred_check_branch
        %213 = sbr.rel (%p210) target = $region32
      $region31: #{tpu_custom_call.1} parent=5 // pred_region
        %s214 = ssub.s32 %s18, 1
        %s215 = sand.u32 %s71, 1
        %s216 = scalar_lea.sflag [#allocation3], %s215
        %s217 = sand.u32 %s71, 1
        %s218 = smul.addr %s217, 8
        %s219 = scalar_lea.vmem [#allocation2], %s218
        // Predicated region
        $region33: #{tpu_custom_call.1} parent=31 // pred_check
          %p220 = pneg %p84
        $region34: #{tpu_custom_call.1} parent=31 // pred_check_branch
          %222 = sbr.rel (%p220) target = $region36
        $region35: #{tpu_custom_call.1} parent=31 // pred_region
          %223 = dma.done %s216, 128
        $region36: #{tpu_custom_call.1} parent=31 // pred_fallthru
          _
        %s224 = sand.u32 %s99, 1
        %s225 = scalar_lea.sflag [#allocation6], %s224
        %s226 = sand.u32 %s99, 1
        %s227 = smul.addr %s226, 8
        %s228 = scalar_lea.vmem [#allocation5], %s227
        // Predicated region
        $region37: #{tpu_custom_call.1} parent=31 // pred_check
          %p229 = pneg %p112
        $region38: #{tpu_custom_call.1} parent=31 // pred_check_branch
          %231 = sbr.rel (%p229) target = $region40
        $region39: #{tpu_custom_call.1} parent=31 // pred_region
          %232 = dma.done %s225, 128
        $region40: #{tpu_custom_call.1} parent=31 // pred_fallthru
          _
        %p233 = scmp.lt.s32.totalorder %s27, 0
        %s234 = scalar_select %p233, %s27, 0
        %s235 = smul.addr %s234, 2
        %s236 = scalar_lea.vmem %s0, %s235
        %p237 = pneg %p56
        %p238 = pneg %p53
        %s239 = sand.u32 %s71, 1
        %s240 = scalar_lea.sflag [#allocation3], %s239
        %s241 = sand.u32 %s71, 1
        %s242 = smul.addr %s241, 8
        %s243 = scalar_lea.vmem [#allocation2], %s242
        %p244 = pneg %p84
        %p245 = pneg %p81
        %s246 = sand.u32 %s99, 1
        %s247 = scalar_lea.sflag [#allocation6], %s246
        %s248 = sand.u32 %s99, 1
        %s249 = smul.addr %s248, 8
        %s250 = scalar_lea.vmem [#allocation5], %s249
        %p251 = pneg %p112
        %p252 = pneg %p109
        %p253 = pneg %p140
        %p254 = pneg %p137
        %s255 = sand.u32 %s127, 1
        %s256 = scalar_lea.sflag [#allocation4], %s255
        %s257 = sand.u32 %s127, 1
        %s258 = smul.addr %s257, 8
        %s259 = scalar_lea.vmem [#allocation7], %s258
        %p260 = scmp.lt.s32.totalorder %s27, 0
        %s261 = scalar_select %p260, %s27, 0
        %s262 = smul.addr %s261, 2
        %s263 = scalar_lea.vmem %s0, %s262
        %s264 = smul.u32 4, %s28
        %s265 = smul.u32 4, %s28
        %s266 = smul.u32 4, %s28
        %v267 = vld [vmem:[%s219] sm:$0xff]
        %v268 = vld [vmem:[%s263] sm:$0x3]
        %270 = vset.pattern.permute.xlu0 0
        %271 = vperm.xlu0 %270, %v268
        %v272 = vpop.permute.xlu0 %271
        %v274 = vunpack.c.l.s4 269488144
        %v275 = vunpack.c.0.s8 %v274
        %v276 = vlaneseq
        %v277 = vshrl.u32 %v276, 7
        %v278 = vsub.s32 %v275, %v277
        %v279 = vrot.slane %v272, %v278
        %v281 = vmul.f32 %v267, %v279
        %v282 = vld [vmem:[%s228] sm:$0xff]
        %v283 = vadd.f32 %v281, %v282
        %284 = vst [vmem:[%s259] sm:$0xff] %v283
        %s285 = sand.u32 %s127, 1
        %s286 = scalar_lea.sflag [#allocation4], %s285
        %s287 = sand.u32 %s127, 1
        %s288 = smul.addr %s287, 8
        %s289 = scalar_lea.vmem [#allocation7], %s288
        // Predicated region
        $region41: #{tpu_custom_call.1} parent=31 // pred_check
          %p290 = pneg %p137
        $region42: #{tpu_custom_call.1} parent=31 // pred_check_branch
          %292 = sbr.rel (%p290) target = $region44
        $region43: #{tpu_custom_call.1} parent=31 // pred_region
          %s293 = smul.u32 4, %s28
          %s295 = ssub.s32 128, 128
          %296 = vsyncadd %s286, %s295
          %s297 = smul.addr %s27, 8
          %s298 = sadd.s32 %s293, %s297
          %s299 = smul.addr %s298, 32
          %s300 = scalar_lea.hbm %s3, %s299
          %s302 = sshll.u32 %s289, 4
          %s303 = int_to_ptr.vmem [resolvable:$true] %s302
          %305 = dma.vmem_to_hbm [thread:$0]  %s303, 128, %s300, %s286
        $region44: #{tpu_custom_call.1} parent=31 // pred_fallthru
          _
      $region32: #{tpu_custom_call.1} parent=5 // pred_fallthru
        _
      %p306 = scmp.le.s32.totalorder 2, %s18
      // Predicated region
      $region45: #{tpu_custom_call.1} parent=5 // pred_check
        %p307 = pneg %p306
      $region46: #{tpu_custom_call.1} parent=5 // pred_check_branch
        %309 = sbr.rel (%p307) target = $region48
      $region47: #{tpu_custom_call.1} parent=5 // pred_region
        %s310 = ssub.s32 %s18, 2
        // Predicated region
        $region49: #{tpu_custom_call.1} parent=47 // pred_check
          %p311 = pneg %p143
        $region50: #{tpu_custom_call.1} parent=47 // pred_check_branch
          %313 = sbr.rel (%p311) target = $region52
        $region51: #{tpu_custom_call.1} parent=47 // pred_region
          %s314 = sand.u32 %s128, 1
          %s315 = scalar_lea.sflag [#allocation4], %s314
          %s316 = sand.u32 %s128, 1
          %s317 = smul.addr %s316, 8
          %s318 = scalar_lea.vmem [#allocation7], %s317
          %319 = dma.done %s315, 128
        $region52: #{tpu_custom_call.1} parent=47 // pred_fallthru
          _
      $region48: #{tpu_custom_call.1} parent=5 // pred_fallthru
        _
    $region6: #{tpu_custom_call.1} parent=1 // loop_footer
      %s22 = sadd.s32 1, %s18
    $region7: #{tpu_custom_call.1} parent=1 // loop_footer_branch
      %17 = sbr.rel target = $region3
    $region8: #{tpu_custom_call.1} parent=1 // loop_exit
      _
    %320 = vsyncpa [#allocation3], 1
    %s321 = scalar_lea.sflag [#allocation3], 1
    %322 = vsyncpa %s321, 1
    %323 = vsyncpa [#allocation6], 1
    %s324 = scalar_lea.sflag [#allocation6], 1
    %325 = vsyncpa %s324, 1
    %326 = vsyncpa [#allocation4], 1
    %s327 = scalar_lea.sflag [#allocation4], 1
    %328 = vsyncpa %s327, 1

</llo_original>
